<compile_context>
chip_gen: v5e
topology: v5e:2x2
jax: 0.10.0
libtpu: 0.0.40
codegen_flags: <defaults>
</compile_context>

<pallas_src>
import functools

import jax
import jax.numpy as jnp
from jax.experimental import pallas as pl
from jax.experimental.pallas import tpu as pltpu


def _round_up(x, m):
    return (x + m - 1) // m * m


def _vmem_capacity_bytes():
    """Physical VMEM per TensorCore; conservative (v7x = 64 MiB) fallback."""
    try:
        return int(pltpu.get_tpu_info().vmem_capacity_bytes)
    except Exception:
        return 64 * 1024 * 1024


# ----------------------------------------------------------------------------
# Fused MLP kernel: one row-tile per grid step, all layers unrolled in-kernel.
# Intermediate activations never round-trip through HBM; the (padded) weights
# and biases stay resident in VMEM for the whole grid.
# ----------------------------------------------------------------------------
def _mlp_kernel(*refs, num_layers):
    # refs = (x_ref, w0, b0, w1, b1, ..., w_{L-1}, b_{L-1}, out_ref)
    x_ref, out_ref = refs[0], refs[-1]
    # Cast to the MXU compute dtype (bf16) in-kernel: avoids a wrapper-side
    # HBM cast pass over the activations.
    h = x_ref[...].astype(refs[1].dtype)
    for l in range(num_layers):
        w_ref = refs[1 + 2 * l]                      # (K_p, N_p) bf16, VMEM resident
        b_ref = refs[2 + 2 * l]                      # (1,  N_p)  f32
        acc = jnp.dot(h, w_ref[...], preferred_element_type=jnp.float32)
        acc = acc + b_ref[...]                       # (TM, N_p)  f32
        if l < num_layers - 1:
            h = jnp.maximum(acc, 0.0).astype(w_ref.dtype)   # ReLU, back to bf16
        else:
            out_ref[...] = acc.astype(out_ref.dtype)        # last layer: no ReLU
    # TODO(synk): if a layer's padded N is very wide and load/store slots
    # saturate, split that layer's output into 256-lane chunks here instead of
    # shrinking the row tile.


# ----------------------------------------------------------------------------
# One-time (outside the hot path) weight preparation: pad feature dims to a
# multiple of 128 (lane-dense) and cast weights to the MXU compute dtype.
# ----------------------------------------------------------------------------
def prepare_params(params, compute_dtype=jnp.bfloat16, feature_multiple=128):
    """params: list of (w, b), w shape (in, out) == torch Linear weight.T."""
    assert feature_multiple % 128 == 0
    dims = tuple([params[0][0].shape[0]] + [w.shape[1] for (w, _) in params])
    pdims = [_round_up(d, feature_multiple) for d in dims]
    flat = []
    for l, (w, b) in enumerate(params):
        di, do = w.shape
        pi, po = pdims[l], pdims[l + 1]
        wp = jnp.zeros((pi, po), compute_dtype).at[:di, :do].set(
            w.astype(compute_dtype))
        bp = jnp.zeros((1, po), jnp.float32).at[0, :do].set(
            b.astype(jnp.float32))
        flat += [wp, bp]
    return flat, dims


# ----------------------------------------------------------------------------
# Hot-path forward.
# ----------------------------------------------------------------------------
def mlp_forward(x, prepared, *, dims, tile_rows=512, single_buffer_weights=True):
    """Forward of MLP(input_dim, hidden_dim, output_dim, num_layers).

    x        : (..., input_dim)
    prepared : flat [w0p, b0p, w1p, b1p, ...] from prepare_params
    dims     : original (input_dim, hidden..., output_dim) tuple (static)
    ReLU after every layer except the last (matches the PyTorch module).
    """
    num_layers = len(prepared) // 2
    assert len(dims) == num_layers + 1
    orig_dtype = x.dtype
    lead_shape = x.shape[:-1]
    din, dout = dims[0], dims[-1]
    assert x.shape[-1] == din

    # Padded feature dims, recovered from the prepared weight shapes.
    pdims = [prepared[0].shape[0]] + [prepared[2 * l].shape[1]
                                      for l in range(num_layers)]

    M = 1
    for s in lead_shape:
        M *= s
    x2 = x.reshape(M, din)
    # Only pad the input feature dim when it isn't already lane-aligned; the
    # padded weight rows are zero so the extra columns contribute nothing.
    if pdims[0] != din:
        x2 = jnp.pad(x2, ((0, 0), (0, pdims[0] - din)))

    # ---- row tile (primary tuning knob; sweep per generation) -------------
    tm = min(int(tile_rows), _round_up(M, 8))
    tm = max(8, _round_up(tm, 8))
    if M > 8:   # >= 2 grid steps so the "parallel" axis shards across v7x TCs
        tm = min(tm, _round_up(-(-M // 2), 8))

    # ---- explicit VMEM budget ---------------------------------------------
    wbuf = 1 if single_buffer_weights else 2
    w_bytes = sum(int(prepared[2 * l].size) * prepared[2 * l].dtype.itemsize
                  for l in range(num_layers))
    b_bytes = sum(int(prepared[2 * l + 1].size) * 4 for l in range(num_layers))
    x_item = jnp.dtype(x.dtype).itemsize
    o_item = jnp.dtype(orig_dtype).itemsize

    def footprint(rows):
        io = 2 * rows * pdims[0] * x_item + 2 * rows * pdims[-1] * o_item
        inter = rows * max(pdims[1:]) * (4 + 2)       # f32 acc + bf16 h
        return wbuf * (w_bytes + b_bytes) + io + inter

    vmem_cap = _vmem_capacity_bytes()
    while tm > 8 and footprint(tm) > int(0.7 * vmem_cap):
        tm = max(8, _round_up(tm // 2, 8))
    vmem_limit = min(int(0.9 * vmem_cap),
                     max(32 * 1024 * 1024, 2 * footprint(tm)))
    # TODO(synk): if the padded weights alone approach ~half of usable VMEM
    # (huge hidden dims), switch to an N/K-tiled grid ("arbitrary" K axis with
    # an f32 accumulator scratch) instead of keeping every layer resident.

    # ---- specs --------------------------------------------------------------
    w_mode = pl.Buffered(1) if single_buffer_weights else None
    in_specs = [pl.BlockSpec((tm, pdims[0]), lambda i: (i, 0))]
    for l in range(num_layers):
        pi, po = pdims[l], pdims[l + 1]
        if w_mode is not None:
            in_specs.append(pl.BlockSpec((pi, po), lambda i: (0, 0),
                                         pipeline_mode=w_mode))
            in_specs.append(pl.BlockSpec((1, po), lambda i: (0, 0),
                                         pipeline_mode=w_mode))
        else:
            in_specs.append(pl.BlockSpec((pi, po), lambda i: (0, 0)))
            in_specs.append(pl.BlockSpec((1, po), lambda i: (0, 0)))

    flops = 2 * M * sum(pdims[l] * pdims[l + 1] for l in range(num_layers))
    bytes_accessed = (M * pdims[0] * x_item + w_bytes + b_bytes
                      + M * pdims[-1] * o_item)
    cost = pl.CostEstimate(flops=flops, transcendentals=0,
                           bytes_accessed=bytes_accessed)

    out = pl.pallas_call(
        functools.partial(_mlp_kernel, num_layers=num_layers),
        out_shape=jax.ShapeDtypeStruct((M, pdims[-1]), orig_dtype),
        grid_spec=pltpu.PrefetchScalarGridSpec(
            num_scalar_prefetch=0,
            grid=(pl.cdiv(M, tm),),
            in_specs=in_specs,
            out_specs=pl.BlockSpec((tm, pdims[-1]), lambda i: (i, 0)),
        ),
        compiler_params=pltpu.CompilerParams(
            dimension_semantics=("parallel",),
            vmem_limit_bytes=vmem_limit),
        cost_estimate=cost,
    )(x2, *prepared)

    if pdims[-1] != dout:
        out = out[:, :dout]
    return out.reshape(*lead_shape, dout)


# ----------------------------------------------------------------------------
# Pure-JAX reference (mirrors the PyTorch forward exactly).
# ----------------------------------------------------------------------------
def mlp_reference(x, params):
    h = x
    num_layers = len(params)
    for i, (w, b) in enumerate(params):
        h = h @ w + b
        if i < num_layers - 1:
            h = jax.nn.relu(h)
    return h


def init_params(key, input_dim, hidden_dim, output_dim, num_layers):
    dims = [input_dim] + [hidden_dim] * (num_layers - 1) + [output_dim]
    keys = jax.random.split(key, num_layers)
    params = []
    for l in range(num_layers):
        kw, kb = jax.random.split(keys[l])
        bound = float(dims[l]) ** -0.5                 # torch Linear default init
        w = jax.random.uniform(kw, (dims[l], dims[l + 1]), jnp.float32,
                               -bound, bound)
        b = jax.random.uniform(kb, (dims[l + 1],), jnp.float32, -bound, bound)
        params.append((w, b))
    return params


if __name__ == "__main__":
    # Small shapes consistent with the module: (batch, seq, input_dim) tokens.
    B, S = 2, 8
    input_dim, hidden_dim, output_dim, num_layers = 32, 32, 16, 3

    key = jax.random.PRNGKey(0)
    kx, kp = jax.random.split(key)
    x = jax.random.normal(kx, (B, S, input_dim), jnp.float32)
    params = init_params(kp, input_dim, hidden_dim, output_dim, num_layers)

    # One-time weight preparation (outside the per-call hot path).
    prepared, dims = prepare_params(params)

    fwd = jax.jit(functools.partial(mlp_forward, dims=dims,
                                    single_buffer_weights=True))
    try:
        out = jax.block_until_ready(fwd(x, prepared))
    except Exception:
        # pl.Buffered(1) not accepted on this jax build -> default buffering.
        fwd = jax.jit(functools.partial(mlp_forward, dims=dims,
                                        single_buffer_weights=False))
        out = jax.block_until_ready(fwd(x, prepared))

    assert out.shape == (B, S, output_dim), out.shape

    ref = mlp_reference(x, params)
    max_err = float(jnp.max(jnp.abs(out - ref)))
    assert max_err < 5e-2, f"max abs error vs f32 reference: {max_err}"

    print("KERNEL_OK")
</pallas_src>

<mosaic_0001>
module attributes {stable_mosaic.version = 11 : i64} {
  func.func @_mlp_kernel(%arg0: i32, %arg1: memref<8x128xf32, #tpu.memory_space<vmem>>, %arg2: memref<128x128xbf16, #tpu.memory_space<vmem>>, %arg3: memref<1x128xf32, #tpu.memory_space<vmem>>, %arg4: memref<128x128xbf16, #tpu.memory_space<vmem>>, %arg5: memref<1x128xf32, #tpu.memory_space<vmem>>, %arg6: memref<128x128xbf16, #tpu.memory_space<vmem>>, %arg7: memref<1x128xf32, #tpu.memory_space<vmem>>, %arg8: memref<8x128xf32, #tpu.memory_space<vmem>>) attributes {dimension_semantics = [#tpu.dimension_semantics<parallel>], iteration_bounds = array<i64: 2>, scalar_prefetch = 0 : i64, scratch_operands = 0 : i64, tpu.core_type = #tpu.core_type<tc>, window_params = [{transform_indices = @transform_0, window_bounds = array<i64: 8, 128>}, {pipeline_mode = #tpu.pipeline_mode<synchronous>, transform_indices = @transform_1, window_bounds = array<i64: 128, 128>}, {pipeline_mode = #tpu.pipeline_mode<synchronous>, transform_indices = @transform_2, window_bounds = array<i64: 1, 128>}, {pipeline_mode = #tpu.pipeline_mode<synchronous>, transform_indices = @transform_3, window_bounds = array<i64: 128, 128>}, {pipeline_mode = #tpu.pipeline_mode<synchronous>, transform_indices = @transform_4, window_bounds = array<i64: 1, 128>}, {pipeline_mode = #tpu.pipeline_mode<synchronous>, transform_indices = @transform_5, window_bounds = array<i64: 128, 128>}, {pipeline_mode = #tpu.pipeline_mode<synchronous>, transform_indices = @transform_6, window_bounds = array<i64: 1, 128>}, {transform_indices = @transform_7, window_bounds = array<i64: 8, 128>}]} {
    %c0 = arith.constant 0 : index
    %c0_0 = arith.constant 0 : index
    %0 = vector.load %arg1[%c0, %c0_0] : memref<8x128xf32, #tpu.memory_space<vmem>>, vector<8x128xf32>
    %1 = arith.truncf %0 : vector<8x128xf32> to vector<8x128xbf16>
    %c0_1 = arith.constant 0 : index
    %c0_2 = arith.constant 0 : index
    %2 = vector.load %arg2[%c0_1, %c0_2] : memref<128x128xbf16, #tpu.memory_space<vmem>>, vector<128x128xbf16>
    %cst = arith.constant dense<0.000000e+00> : vector<8x128xf32>
    %3 = tpu.matmul %1, %2, %cst {dimension_numbers = #tpu.dot_dimension_numbers<[1], [0], [0], [1], [0, 0, 1, 1], [], []>} : vector<8x128xbf16>, vector<128x128xbf16>, vector<8x128xf32> -> vector<8x128xf32>
    %c0_3 = arith.constant 0 : index
    %c0_4 = arith.constant 0 : index
    %4 = vector.load %arg3[%c0_3, %c0_4] : memref<1x128xf32, #tpu.memory_space<vmem>>, vector<1x128xf32>
    %5 = vector.broadcast %4 : vector<1x128xf32> to vector<8x128xf32>
    %6 = arith.addf %3, %5 : vector<8x128xf32>
    %cst_5 = arith.constant 0.000000e+00 : f32
    %7 = vector.broadcast %cst_5 : f32 to vector<8x128xf32>
    %8 = arith.maximumf %6, %7 : vector<8x128xf32>
    %9 = arith.truncf %8 : vector<8x128xf32> to vector<8x128xbf16>
    %c0_6 = arith.constant 0 : index
    %c0_7 = arith.constant 0 : index
    %10 = vector.load %arg4[%c0_6, %c0_7] : memref<128x128xbf16, #tpu.memory_space<vmem>>, vector<128x128xbf16>
    %cst_8 = arith.constant dense<0.000000e+00> : vector<8x128xf32>
    %11 = tpu.matmul %9, %10, %cst_8 {dimension_numbers = #tpu.dot_dimension_numbers<[1], [0], [0], [1], [0, 0, 1, 1], [], []>} : vector<8x128xbf16>, vector<128x128xbf16>, vector<8x128xf32> -> vector<8x128xf32>
    %c0_9 = arith.constant 0 : index
    %c0_10 = arith.constant 0 : index
    %12 = vector.load %arg5[%c0_9, %c0_10] : memref<1x128xf32, #tpu.memory_space<vmem>>, vector<1x128xf32>
    %13 = vector.broadcast %12 : vector<1x128xf32> to vector<8x128xf32>
    %14 = arith.addf %11, %13 : vector<8x128xf32>
    %cst_11 = arith.constant 0.000000e+00 : f32
    %15 = vector.broadcast %cst_11 : f32 to vector<8x128xf32>
    %16 = arith.maximumf %14, %15 : vector<8x128xf32>
    %17 = arith.truncf %16 : vector<8x128xf32> to vector<8x128xbf16>
    %c0_12 = arith.constant 0 : index
    %c0_13 = arith.constant 0 : index
    %18 = vector.load %arg6[%c0_12, %c0_13] : memref<128x128xbf16, #tpu.memory_space<vmem>>, vector<128x128xbf16>
    %cst_14 = arith.constant dense<0.000000e+00> : vector<8x128xf32>
    %19 = tpu.matmul %17, %18, %cst_14 {dimension_numbers = #tpu.dot_dimension_numbers<[1], [0], [0], [1], [0, 0, 1, 1], [], []>} : vector<8x128xbf16>, vector<128x128xbf16>, vector<8x128xf32> -> vector<8x128xf32>
    %c0_15 = arith.constant 0 : index
    %c0_16 = arith.constant 0 : index
    %20 = vector.load %arg7[%c0_15, %c0_16] : memref<1x128xf32, #tpu.memory_space<vmem>>, vector<1x128xf32>
    %21 = vector.broadcast %20 : vector<1x128xf32> to vector<8x128xf32>
    %22 = arith.addf %19, %21 : vector<8x128xf32>
    %c0_17 = arith.constant 0 : index
    %c0_18 = arith.constant 0 : index
    %23 = vector.load %arg8[%c0_17, %c0_18] : memref<8x128xf32, #tpu.memory_space<vmem>>, vector<8x128xf32>
    tpu.vector_store %arg8[%c0_17, %c0_18], %22 {strides = array<i32>} : memref<8x128xf32, #tpu.memory_space<vmem>>, vector<8x128xf32>,
    return
  }
  func.func @transform_0(%arg0: i32) -> (i32, i32) {
    %c0_i32 = arith.constant 0 : i32
    %c0_i32_0 = arith.constant 0 : i32
    return %arg0, %c0_i32 : i32, i32
  }
  func.func @transform_1(%arg0: i32) -> (i32, i32) {
    %c0_i32 = arith.constant 0 : i32
    %c0_i32_0 = arith.constant 0 : i32
    %c0_i32_1 = arith.constant 0 : i32
    return %c0_i32, %c0_i32_0 : i32, i32
  }
  func.func @transform_2(%arg0: i32) -> (i32, i32) {
    %c0_i32 = arith.constant 0 : i32
    %c0_i32_0 = arith.constant 0 : i32
    %c0_i32_1 = arith.constant 0 : i32
    return %c0_i32, %c0_i32_0 : i32, i32
  }
  func.func @transform_3(%arg0: i32) -> (i32, i32) {
    %c0_i32 = arith.constant 0 : i32
    %c0_i32_0 = arith.constant 0 : i32
    %c0_i32_1 = arith.constant 0 : i32
    return %c0_i32, %c0_i32_0 : i32, i32
  }
  func.func @transform_4(%arg0: i32) -> (i32, i32) {
    %c0_i32 = arith.constant 0 : i32
    %c0_i32_0 = arith.constant 0 : i32
    %c0_i32_1 = arith.constant 0 : i32
    return %c0_i32, %c0_i32_0 : i32, i32
  }
  func.func @transform_5(%arg0: i32) -> (i32, i32) {
    %c0_i32 = arith.constant 0 : i32
    %c0_i32_0 = arith.constant 0 : i32
    %c0_i32_1 = arith.constant 0 : i32
    return %c0_i32, %c0_i32_0 : i32, i32
  }
  func.func @transform_6(%arg0: i32) -> (i32, i32) {
    %c0_i32 = arith.constant 0 : i32
    %c0_i32_0 = arith.constant 0 : i32
    %c0_i32_1 = arith.constant 0 : i32
    return %c0_i32, %c0_i32_0 : i32, i32
  }
  func.func @transform_7(%arg0: i32) -> (i32, i32) {
    %c0_i32 = arith.constant 0 : i32
    %c0_i32_0 = arith.constant 0 : i32
    return %arg0, %c0_i32 : i32, i32
  }
}

module attributes {stable_mosaic.version = 11 : i64} {
  func.func @_mlp_kernel(%arg0: i32, %arg1: memref<8x128xf32, #tpu.memory_space<vmem>>, %arg2: memref<128x128xbf16, #tpu.memory_space<vmem>>, %arg3: memref<1x128xf32, #tpu.memory_space<vmem>>, %arg4: memref<128x128xbf16, #tpu.memory_space<vmem>>, %arg5: memref<1x128xf32, #tpu.memory_space<vmem>>, %arg6: memref<128x128xbf16, #tpu.memory_space<vmem>>, %arg7: memref<1x128xf32, #tpu.memory_space<vmem>>, %arg8: memref<8x128xf32, #tpu.memory_space<vmem>>) attributes {dimension_semantics = [#tpu.dimension_semantics<parallel>], iteration_bounds = array<i64: 2>, scalar_prefetch = 0 : i64, scratch_operands = 0 : i64, tpu.core_type = #tpu.core_type<tc>, window_params = [{transform_indices = @transform_0, window_bounds = array<i64: 8, 128>}, {pipeline_mode = #tpu.pipeline_mode<synchronous>, transform_indices = @transform_1, window_bounds = array<i64: 128, 128>}, {pipeline_mode = #tpu.pipeline_mode<synchronous>, transform_indices = @transform_2, window_bounds = array<i64: 1, 128>}, {pipeline_mode = #tpu.pipeline_mode<synchronous>, transform_indices = @transform_3, window_bounds = array<i64: 128, 128>}, {pipeline_mode = #tpu.pipeline_mode<synchronous>, transform_indices = @transform_4, window_bounds = array<i64: 1, 128>}, {pipeline_mode = #tpu.pipeline_mode<synchronous>, transform_indices = @transform_5, window_bounds = array<i64: 128, 128>}, {pipeline_mode = #tpu.pipeline_mode<synchronous>, transform_indices = @transform_6, window_bounds = array<i64: 1, 128>}, {transform_indices = @transform_7, window_bounds = array<i64: 8, 128>}]} {
    %c0 = arith.constant 0 : index
    %c0_0 = arith.constant 0 : index
    %0 = vector.load %arg1[%c0, %c0_0] : memref<8x128xf32, #tpu.memory_space<vmem>>, vector<8x128xf32>
    %1 = arith.truncf %0 : vector<8x128xf32> to vector<8x128xbf16>
    %c0_1 = arith.constant 0 : index
    %c0_2 = arith.constant 0 : index
    %2 = vector.load %arg2[%c0_1, %c0_2] : memref<128x128xbf16, #tpu.memory_space<vmem>>, vector<128x128xbf16>
    %cst = arith.constant dense<0.000000e+00> : vector<8x128xf32>
    %3 = tpu.matmul %1, %2, %cst {dimension_numbers = #tpu.dot_dimension_numbers<[1], [0], [0], [1], [0, 0, 1, 1], [], []>} : vector<8x128xbf16>, vector<128x128xbf16>, vector<8x128xf32> -> vector<8x128xf32>
    %c0_3 = arith.constant 0 : index
    %c0_4 = arith.constant 0 : index
    %4 = vector.load %arg3[%c0_3, %c0_4] : memref<1x128xf32, #tpu.memory_space<vmem>>, vector<1x128xf32>
    %5 = vector.broadcast %4 : vector<1x128xf32> to vector<8x128xf32>
    %6 = arith.addf %3, %5 : vector<8x128xf32>
    %cst_5 = arith.constant 0.000000e+00 : f32
    %7 = vector.broadcast %cst_5 : f32 to vector<8x128xf32>
    %8 = arith.maximumf %6, %7 : vector<8x128xf32>
    %9 = arith.truncf %8 : vector<8x128xf32> to vector<8x128xbf16>
    %c0_6 = arith.constant 0 : index
    %c0_7 = arith.constant 0 : index
    %10 = vector.load %arg4[%c0_6, %c0_7] : memref<128x128xbf16, #tpu.memory_space<vmem>>, vector<128x128xbf16>
    %cst_8 = arith.constant dense<0.000000e+00> : vector<8x128xf32>
    %11 = tpu.matmul %9, %10, %cst_8 {dimension_numbers = #tpu.dot_dimension_numbers<[1], [0], [0], [1], [0, 0, 1, 1], [], []>} : vector<8x128xbf16>, vector<128x128xbf16>, vector<8x128xf32> -> vector<8x128xf32>
    %c0_9 = arith.constant 0 : index
    %c0_10 = arith.constant 0 : index
    %12 = vector.load %arg5[%c0_9, %c0_10] : memref<1x128xf32, #tpu.memory_space<vmem>>, vector<1x128xf32>
    %13 = vector.broadcast %12 : vector<1x128xf32> to vector<8x128xf32>
    %14 = arith.addf %11, %13 : vector<8x128xf32>
    %cst_11 = arith.constant 0.000000e+00 : f32
    %15 = vector.broadcast %cst_11 : f32 to vector<8x128xf32>
    %16 = arith.maximumf %14, %15 : vector<8x128xf32>
    %17 = arith.truncf %16 : vector<8x128xf32> to vector<8x128xbf16>
    %c0_12 = arith.constant 0 : index
    %c0_13 = arith.constant 0 : index
    %18 = vector.load %arg6[%c0_12, %c0_13] : memref<128x128xbf16, #tpu.memory_space<vmem>>, vector<128x128xbf16>
    %cst_14 = arith.constant dense<0.000000e+00> : vector<8x128xf32>
    %19 = tpu.matmul %17, %18, %cst_14 {dimension_numbers = #tpu.dot_dimension_numbers<[1], [0], [0], [1], [0, 0, 1, 1], [], []>} : vector<8x128xbf16>, vector<128x128xbf16>, vector<8x128xf32> -> vector<8x128xf32>
    %c0_15 = arith.constant 0 : index
    %c0_16 = arith.constant 0 : index
    %20 = vector.load %arg7[%c0_15, %c0_16] : memref<1x128xf32, #tpu.memory_space<vmem>>, vector<1x128xf32>
    %21 = vector.broadcast %20 : vector<1x128xf32> to vector<8x128xf32>
    %22 = arith.addf %19, %21 : vector<8x128xf32>
    %c0_17 = arith.constant 0 : index
    %c0_18 = arith.constant 0 : index
    %23 = vector.load %arg8[%c0_17, %c0_18] : memref<8x128xf32, #tpu.memory_space<vmem>>, vector<8x128xf32>
    tpu.vector_store %arg8[%c0_17, %c0_18], %22 {strides = array<i32>} : memref<8x128xf32, #tpu.memory_space<vmem>>, vector<8x128xf32>,
    return
  }
  func.func @transform_0(%arg0: i32) -> (i32, i32) {
    %c0_i32 = arith.constant 0 : i32
    %c0_i32_0 = arith.constant 0 : i32
    return %arg0, %c0_i32 : i32, i32
  }
  func.func @transform_1(%arg0: i32) -> (i32, i32) {
    %c0_i32 = arith.constant 0 : i32
    %c0_i32_0 = arith.constant 0 : i32
    %c0_i32_1 = arith.constant 0 : i32
    return %c0_i32, %c0_i32_0 : i32, i32
  }
  func.func @transform_2(%arg0: i32) -> (i32, i32) {
    %c0_i32 = arith.constant 0 : i32
    %c0_i32_0 = arith.constant 0 : i32
    %c0_i32_1 = arith.constant 0 : i32
    return %c0_i32, %c0_i32_0 : i32, i32
  }
  func.func @transform_3(%arg0: i32) -> (i32, i32) {
    %c0_i32 = arith.constant 0 : i32
    %c0_i32_0 = arith.constant 0 : i32
    %c0_i32_1 = arith.constant 0 : i32
    return %c0_i32, %c0_i32_0 : i32, i32
  }
  func.func @transform_4(%arg0: i32) -> (i32, i32) {
    %c0_i32 = arith.constant 0 : i32
    %c0_i32_0 = arith.constant 0 : i32
    %c0_i32_1 = arith.constant 0 : i32
    return %c0_i32, %c0_i32_0 : i32, i32
  }
  func.func @transform_5(%arg0: i32) -> (i32, i32) {
    %c0_i32 = arith.constant 0 : i32
    %c0_i32_0 = arith.constant 0 : i32
    %c0_i32_1 = arith.constant 0 : i32
    return %c0_i32, %c0_i32_0 : i32, i32
  }
  func.func @transform_6(%arg0: i32) -> (i32, i32) {
    %c0_i32 = arith.constant 0 : i32
    %c0_i32_0 = arith.constant 0 : i32
    %c0_i32_1 = arith.constant 0 : i32
    return %c0_i32, %c0_i32_0 : i32, i32
  }
  func.func @transform_7(%arg0: i32) -> (i32, i32) {
    %c0_i32 = arith.constant 0 : i32
    %c0_i32_0 = arith.constant 0 : i32
    return %arg0, %c0_i32 : i32, i32
  }
}

</mosaic_0001>

<llo_original>
// kernel: mlp_forward.1
$region0: #{mlp_forward.1}
  #allocation0 [shape = 'u32[]', space=smem, size = 0x4, offset = 0x4, fixed_abs, tag = 'smem constant byte address 0x4 - core index']
  #allocation1 [shape = 'u32[72,128]{1,0:T(1,128)}', space=vmem, size = 0x9000, scoped, tag = 'internal scratch']
  %s0 = inlined_call_operand.vmem [shape: f32[16,128], index: 0, kind: input, shape index: {}]
  %s1 = inlined_call_operand.hbm [shape: bf16[128,128], index: 1, kind: input, shape index: {}]
  %s2 = inlined_call_operand.vmem [shape: f32[1,128], index: 2, kind: input, shape index: {}]
  %s3 = inlined_call_operand.hbm [shape: bf16[128,128], index: 3, kind: input, shape index: {}]
  %s4 = inlined_call_operand.vmem [shape: f32[1,128], index: 4, kind: input, shape index: {}]
  %s5 = inlined_call_operand.hbm [shape: bf16[128,128], index: 5, kind: input, shape index: {}]
  %s6 = inlined_call_operand.vmem [shape: f32[1,128], index: 6, kind: input, shape index: {}]
  %s7 = inlined_call_operand.vmem [shape: f32[16,128], index: 7, kind: output, shape index: {}]
  %s8 = sld [smem:[#allocation0]]
  $region73: #{mlp_forward.1} parent=0
    _
  %s10 = ssub.s32 1, %s8
  %s11 = scalar_select 0, %s10, %s8
  $region1: #{mlp_forward.1} parent=0
    #allocation2 [shape = 'u8[32768]{0}', space=vmem, size = 0x8000, scoped, tag = 'input window, operand 1, single buffered']
    #allocation3 [shape = 's32[2]{0}', space=sflag, size = 0x8, scoped, tag = 'scoped memory for mlp_forward.1']
    #allocation4 [shape = 'u8[32768]{0}', space=vmem, size = 0x8000, scoped, tag = 'input window, operand 3, single buffered']
    #allocation5 [shape = 's32[1]{0}', space=sflag, size = 0x4, scoped, tag = 'scoped memory for mlp_forward.1']
    #allocation6 [shape = 'u8[32768]{0}', space=vmem, size = 0x8000, scoped, tag = 'input window, operand 5, single buffered']
    %12 = vsyncpa [#allocation3], 0
    %13 = vsyncpa [#allocation5], 0
    loop: start=0, step=1, limit=4
    $region2: #{mlp_forward.1} parent=1 // loop_pre_header
      _
    $region3: #{mlp_forward.1} parent=1 // loop_header
      %s15 = sphi 0, %s19
      %p16 = scmp.ge.s32.totalorder %s15, 4
      %s25 = sphi 0, %s27
      %s28 = sphi 0, %s25
      %s29 = sphi 0, %s28
      %s45 = sphi 0, %s29
      %s49 = sphi 0, %s49
      %s51 = sphi 0, %s49
      %s52 = sphi 0, %s51
      %s66 = sphi 0, %s52
      %s70 = sphi 0, %s70
      %s72 = sphi 0, %s70
      %s73 = sphi 0, %s72
      %s87 = sphi 0, %s73
      %s91 = sphi 0, %s91
      %s93 = sphi 0, %s91
      %s94 = sphi 0, %s93
      %s108 = sphi 0, %s94
      %s112 = sphi 0, %s112
      %s114 = sphi 0, %s112
      %s115 = sphi 0, %s114
      %s129 = sphi 0, %s115
      %s133 = sphi 0, %s133
      %s135 = sphi 0, %s133
      %s136 = sphi 0, %s135
      %s150 = sphi 0, %s136
      %s154 = sphi 0, %s154
      %s156 = sphi 0, %s154
      %s157 = sphi 0, %s156
      %s171 = sphi 0, %s157
      %s177 = sphi 0, %s179
      %s180 = sphi 0, %s177
      %s181 = sphi 0, %s180
      %s197 = sphi 0, %s181
    $region4: #{mlp_forward.1} parent=1 // loop_header_branch
      %18 = sbr.rel (%p16) target = $region8
    $region5: #{mlp_forward.1} parent=1 // loop_body
      %s20 = ssub.s32 %s15, 1
      %s21 = ssub.s32 %s15, 2
      %s22 = sadd.s32 %s15, 1
      %s23 = ssub.s32 %s15, %s22
      %p24 = scmp.eq.s32.totalorder %s23, 0
      %s26 = sadd.s32 %s25, 1
      %s27 = scalar_select %p24, %s25, %s26
      %p30 = pneg %p24
      %p31 = scmp.eq.s32.totalorder %s15, 1
      %p32 = por %p30, %p31
      %p33 = scmp.ne.s32.totalorder %s25, %s28
      %p34 = scmp.eq.s32.totalorder %s15, 0
      %p35 = por %p33, %p34
      %p36 = scmp.ne.s32.totalorder %s25, %s28
      %p37 = scmp.eq.s32.totalorder %s20, 1
      %p38 = por %p36, %p37
      %p39 = scmp.ne.s32.totalorder %s28, %s29
      %p40 = scmp.eq.s32.totalorder %s20, 0
      %p41 = por %p39, %p40
      %p42 = scmp.ne.s32.totalorder %s28, %s29
      %p43 = scmp.eq.s32.totalorder %s21, 1
      %p44 = por %p42, %p43
      %p46 = scmp.ne.s32.totalorder %s29, %s45
      %p47 = scmp.eq.s32.totalorder %s21, 0
      %p48 = por %p46, %p47
      %s50 = sadd.s32 %s49, 1
      %p53 = scmp.eq.s32.totalorder %s15, 1
      %p54 = scmp.ne.s32.totalorder %s49, %s51
      %p55 = scmp.eq.s32.totalorder %s15, 0
      %p56 = por %p54, %p55
      %p57 = scmp.ne.s32.totalorder %s49, %s51
      %p58 = scmp.eq.s32.totalorder %s20, 1
      %p59 = por %p57, %p58
      %p60 = scmp.ne.s32.totalorder %s51, %s52
      %p61 = scmp.eq.s32.totalorder %s20, 0
      %p62 = por %p60, %p61
      %p63 = scmp.ne.s32.totalorder %s51, %s52
      %p64 = scmp.eq.s32.totalorder %s21, 1
      %p65 = por %p63, %p64
      %p67 = scmp.ne.s32.totalorder %s52, %s66
      %p68 = scmp.eq.s32.totalorder %s21, 0
      %p69 = por %p67, %p68
      %s71 = sadd.s32 %s70, 1
      %p74 = scmp.eq.s32.totalorder %s15, 1
      %p75 = scmp.ne.s32.totalorder %s70, %s72
      %p76 = scmp.eq.s32.totalorder %s15, 0
      %p77 = por %p75, %p76
      %p78 = scmp.ne.s32.totalorder %s70, %s72
      %p79 = scmp.eq.s32.totalorder %s20, 1
      %p80 = por %p78, %p79
      %p81 = scmp.ne.s32.totalorder %s72, %s73
      %p82 = scmp.eq.s32.totalorder %s20, 0
      %p83 = por %p81, %p82
      %p84 = scmp.ne.s32.totalorder %s72, %s73
      %p85 = scmp.eq.s32.totalorder %s21, 1
      %p86 = por %p84, %p85
      %p88 = scmp.ne.s32.totalorder %s73, %s87
      %p89 = scmp.eq.s32.totalorder %s21, 0
      %p90 = por %p88, %p89
      %s92 = sadd.s32 %s91, 1
      %p95 = scmp.eq.s32.totalorder %s15, 1
      %p96 = scmp.ne.s32.totalorder %s91, %s93
      %p97 = scmp.eq.s32.totalorder %s15, 0
      %p98 = por %p96, %p97
      %p99 = scmp.ne.s32.totalorder %s91, %s93
      %p100 = scmp.eq.s32.totalorder %s20, 1
      %p101 = por %p99, %p100
      %p102 = scmp.ne.s32.totalorder %s93, %s94
      %p103 = scmp.eq.s32.totalorder %s20, 0
      %p104 = por %p102, %p103
      %p105 = scmp.ne.s32.totalorder %s93, %s94
      %p106 = scmp.eq.s32.totalorder %s21, 1
      %p107 = por %p105, %p106
      %p109 = scmp.ne.s32.totalorder %s94, %s108
      %p110 = scmp.eq.s32.totalorder %s21, 0
      %p111 = por %p109, %p110
      %s113 = sadd.s32 %s112, 1
      %p116 = scmp.eq.s32.totalorder %s15, 1
      %p117 = scmp.ne.s32.totalorder %s112, %s114
      %p118 = scmp.eq.s32.totalorder %s15, 0
      %p119 = por %p117, %p118
      %p120 = scmp.ne.s32.totalorder %s112, %s114
      %p121 = scmp.eq.s32.totalorder %s20, 1
      %p122 = por %p120, %p121
      %p123 = scmp.ne.s32.totalorder %s114, %s115
      %p124 = scmp.eq.s32.totalorder %s20, 0
      %p125 = por %p123, %p124
      %p126 = scmp.ne.s32.totalorder %s114, %s115
      %p127 = scmp.eq.s32.totalorder %s21, 1
      %p128 = por %p126, %p127
      %p130 = scmp.ne.s32.totalorder %s115, %s129
      %p131 = scmp.eq.s32.totalorder %s21, 0
      %p132 = por %p130, %p131
      %s134 = sadd.s32 %s133, 1
      %p137 = scmp.eq.s32.totalorder %s15, 1
      %p138 = scmp.ne.s32.totalorder %s133, %s135
      %p139 = scmp.eq.s32.totalorder %s15, 0
      %p140 = por %p138, %p139
      %p141 = scmp.ne.s32.totalorder %s133, %s135
      %p142 = scmp.eq.s32.totalorder %s20, 1
      %p143 = por %p141, %p142
      %p144 = scmp.ne.s32.totalorder %s135, %s136
      %p145 = scmp.eq.s32.totalorder %s20, 0
      %p146 = por %p144, %p145
      %p147 = scmp.ne.s32.totalorder %s135, %s136
      %p148 = scmp.eq.s32.totalorder %s21, 1
      %p149 = por %p147, %p148
      %p151 = scmp.ne.s32.totalorder %s136, %s150
      %p152 = scmp.eq.s32.totalorder %s21, 0
      %p153 = por %p151, %p152
      %s155 = sadd.s32 %s154, 1
      %p158 = scmp.eq.s32.totalorder %s15, 1
      %p159 = scmp.ne.s32.totalorder %s154, %s156
      %p160 = scmp.eq.s32.totalorder %s15, 0
      %p161 = por %p159, %p160
      %p162 = scmp.ne.s32.totalorder %s154, %s156
      %p163 = scmp.eq.s32.totalorder %s20, 1
      %p164 = por %p162, %p163
      %p165 = scmp.ne.s32.totalorder %s156, %s157
      %p166 = scmp.eq.s32.totalorder %s20, 0
      %p167 = por %p165, %p166
      %p168 = scmp.ne.s32.totalorder %s156, %s157
      %p169 = scmp.eq.s32.totalorder %s21, 1
      %p170 = por %p168, %p169
      %p172 = scmp.ne.s32.totalorder %s157, %s171
      %p173 = scmp.eq.s32.totalorder %s21, 0
      %p174 = por %p172, %p173
      %s175 = ssub.s32 %s15, %s22
      %p176 = scmp.eq.s32.totalorder %s175, 0
      %s178 = sadd.s32 %s177, 1
      %s179 = scalar_select %p176, %s177, %s178
      %p182 = pneg %p176
      %p183 = scmp.eq.s32.totalorder %s15, 1
      %p184 = por %p182, %p183
      %p185 = scmp.ne.s32.totalorder %s177, %s180
      %p186 = scmp.eq.s32.totalorder %s15, 0
      %p187 = por %p185, %p186
      %p188 = scmp.ne.s32.totalorder %s177, %s180
      %p189 = scmp.eq.s32.totalorder %s20, 1
      %p190 = por %p188, %p189
      %p191 = scmp.ne.s32.totalorder %s180, %s181
      %p192 = scmp.eq.s32.totalorder %s20, 0
      %p193 = por %p191, %p192
      %p194 = scmp.ne.s32.totalorder %s180, %s181
      %p195 = scmp.eq.s32.totalorder %s21, 1
      %p196 = por %p194, %p195
      %p198 = scmp.ne.s32.totalorder %s181, %s197
      %p199 = scmp.eq.s32.totalorder %s21, 0
      %p200 = por %p198, %p199
      %p201 = scmp.le.s32.totalorder 1, %s15
      %p202 = scmp.lt.s32.totalorder %s15, 3
      %p203 = pnand %p201, %p202
      %p204 = pneg %p203
      // Predicated region
      $region9: #{mlp_forward.1} parent=5 // pred_check
        _
      $region10: #{mlp_forward.1} parent=5 // pred_check_branch
        %206 = sbr.rel (%p203) target = $region12
      $region11: #{mlp_forward.1} parent=5 // pred_region
        %s207 = ssub.s32 %s15, 1
        // Predicated region
        $region13: #{mlp_forward.1} parent=11 // pred_check
          %p208 = pneg %p62
        $region14: #{mlp_forward.1} parent=11 // pred_check_branch
          %210 = sbr.rel (%p208) target = $region16
        $region15: #{mlp_forward.1} parent=11 // pred_region
          %212 = vsyncadd [#allocation3], 0
          %s213 = sshll.u32 %s1, 4
          %s214 = int_to_ptr.hbm [resolvable:$true] %s213
          %s215 = sshll.u32 [#allocation2], 4
          %s216 = int_to_ptr.vmem [resolvable:$true] %s215
          %221 = dma.hbm_to_vmem [thread:$0]  %s214, 1024, %s216, [#allocation3], 64, 64, 4
        $region16: #{mlp_forward.1} parent=11 // pred_fallthru
          _
        // Predicated region
        $region17: #{mlp_forward.1} parent=11 // pred_check
          %p222 = pneg %p83
        $region18: #{mlp_forward.1} parent=11 // pred_check_branch
          %224 = sbr.rel (%p222) target = $region20
        $region19: #{mlp_forward.1} parent=11 // pred_region
          _
        $region20: #{mlp_forward.1} parent=11 // pred_fallthru
          _
        // Predicated region
        $region21: #{mlp_forward.1} parent=11 // pred_check
          %p225 = pneg %p104
        $region22: #{mlp_forward.1} parent=11 // pred_check_branch
          %227 = sbr.rel (%p225) target = $region24
        $region23: #{mlp_forward.1} parent=11 // pred_region
          %229 = vsyncadd [#allocation5], 0
          %s230 = sshll.u32 %s3, 4
          %s231 = int_to_ptr.hbm [resolvable:$true] %s230
          %s232 = sshll.u32 [#allocation4], 4
          %s233 = int_to_ptr.vmem [resolvable:$true] %s232
          %238 = dma.hbm_to_vmem [thread:$0]  %s231, 1024, %s233, [#allocation5], 64, 64, 4
        $region24: #{mlp_forward.1} parent=11 // pred_fallthru
          _
        // Predicated region
        $region25: #{mlp_forward.1} parent=11 // pred_check
          %p239 = pneg %p125
        $region26: #{mlp_forward.1} parent=11 // pred_check_branch
          %241 = sbr.rel (%p239) target = $region28
        $region27: #{mlp_forward.1} parent=11 // pred_region
          _
        $region28: #{mlp_forward.1} parent=11 // pred_fallthru
          _
        // Predicated region
        $region29: #{mlp_forward.1} parent=11 // pred_check
          %p242 = pneg %p146
        $region30: #{mlp_forward.1} parent=11 // pred_check_branch
          %244 = sbr.rel (%p242) target = $region32
        $region31: #{mlp_forward.1} parent=11 // pred_region
          %246 = vsyncadd [#allocation5], 0
          %s247 = sshll.u32 %s5, 4
          %s248 = int_to_ptr.hbm [resolvable:$true] %s247
          %s249 = sshll.u32 [#allocation6], 4
          %s250 = int_to_ptr.vmem [resolvable:$true] %s249
          %255 = dma.hbm_to_vmem [thread:$0]  %s248, 1024, %s250, [#allocation5], 64, 64, 4
        $region32: #{mlp_forward.1} parent=11 // pred_fallthru
          _
        // Predicated region
        $region33: #{mlp_forward.1} parent=11 // pred_check
          %p256 = pneg %p167
        $region34: #{mlp_forward.1} parent=11 // pred_check_branch
          %258 = sbr.rel (%p256) target = $region36
        $region35: #{mlp_forward.1} parent=11 // pred_region
          _
        $region36: #{mlp_forward.1} parent=11 // pred_fallthru
          _
      $region12: #{mlp_forward.1} parent=5 // pred_fallthru
        _
      %p259 = scmp.lt.s32.totalorder %s15, 2
      // Predicated region
      $region37: #{mlp_forward.1} parent=5 // pred_check
        %p260 = pneg %p259
      $region38: #{mlp_forward.1} parent=5 // pred_check_branch
        %262 = sbr.rel (%p260) target = $region40
      $region39: #{mlp_forward.1} parent=5 // pred_region
        // Predicated region
        $region41: #{mlp_forward.1} parent=39 // pred_check
          %p263 = pneg %p35
        $region42: #{mlp_forward.1} parent=39 // pred_check_branch
          %265 = sbr.rel (%p263) target = $region44
        $region43: #{mlp_forward.1} parent=39 // pred_region
          %p266 = scmp.lt.s32.totalorder %s15, 1
          %s267 = scalar_select %p266, %s15, 1
          %s268 = smul.addr %s267, 8
          %s269 = scalar_lea.vmem %s0, %s268
        $region44: #{mlp_forward.1} parent=39 // pred_fallthru
          _
      $region40: #{mlp_forward.1} parent=5 // pred_fallthru
        _
      %p270 = scmp.le.s32.totalorder 1, %s15
      %p271 = scmp.lt.s32.totalorder %s15, 3
      %p272 = pnand %p270, %p271
      %p273 = pneg %p272
      // Predicated region
      $region45: #{mlp_forward.1} parent=5 // pred_check
        _
      $region46: #{mlp_forward.1} parent=5 // pred_check_branch
        %275 = sbr.rel (%p272) target = $region48
      $region47: #{mlp_forward.1} parent=5 // pred_region
        %s276 = ssub.s32 %s15, 1
        // Predicated region
        $region49: #{mlp_forward.1} parent=47 // pred_check
          %p277 = pneg %p62
        $region50: #{mlp_forward.1} parent=47 // pred_check_branch
          %279 = sbr.rel (%p277) target = $region52
        $region51: #{mlp_forward.1} parent=47 // pred_region
          %281 = dma.done [#allocation3], 1024
        $region52: #{mlp_forward.1} parent=47 // pred_fallthru
          _
        // Predicated region
        $region53: #{mlp_forward.1} parent=47 // pred_check
          %p282 = pneg %p104
        $region54: #{mlp_forward.1} parent=47 // pred_check_branch
          %284 = sbr.rel (%p282) target = $region56
        $region55: #{mlp_forward.1} parent=47 // pred_region
          %286 = dma.done [#allocation5], 1024
        $region56: #{mlp_forward.1} parent=47 // pred_fallthru
          _
        // Predicated region
        $region57: #{mlp_forward.1} parent=47 // pred_check
          %p287 = pneg %p146
        $region58: #{mlp_forward.1} parent=47 // pred_check_branch
          %289 = sbr.rel (%p287) target = $region60
        $region59: #{mlp_forward.1} parent=47 // pred_region
          %291 = dma.done [#allocation5], 1024
        $region60: #{mlp_forward.1} parent=47 // pred_fallthru
          _
        %p292 = scmp.lt.s32.totalorder %s20, 1
        %s293 = scalar_select %p292, %s20, 1
        %s294 = smul.addr %s293, 8
        %s295 = scalar_lea.vmem %s0, %s294
        %p296 = pneg %p41
        %p297 = pneg %p38
        %p298 = pneg %p62
        %p299 = pneg %p59
        %p300 = pneg %p83
        %p301 = pneg %p80
        %p302 = pneg %p104
        %p303 = pneg %p101
        %p304 = pneg %p125
        %p305 = pneg %p122
        %p306 = pneg %p146
        %p307 = pneg %p143
        %p308 = pneg %p167
        %p309 = pneg %p164
        %p310 = pneg %p193
        %p311 = pneg %p190
        %p312 = scmp.lt.s32.totalorder %s20, 1
        %s313 = scalar_select %p312, %s20, 1
        %s314 = smul.addr %s313, 8
        %s315 = scalar_lea.vmem %s7, %s314
        %p316 = scmp.lt.s32.totalorder %s20, 1
        %s317 = scalar_select %p316, %s20, 1
        %s318 = smul.addr %s317, 8
        %s319 = scalar_lea.vmem %s0, %s318
        %p320 = scmp.lt.s32.totalorder %s20, 1
        %s321 = scalar_select %p320, %s20, 1
        %s322 = smul.addr %s321, 8
        %s323 = scalar_lea.vmem %s7, %s322
        %v324 = vld [vmem:[%s319] sm:$0xff]
        %v325 = vpack.c.bf16 %v324, %v324
        %v326 = vld [vmem:[#allocation2] sm:$0xf]
        %v327 = vld [vmem:[#allocation2 + $0x4] sm:$0xf]
        %v328 = vld [vmem:[#allocation2 + $0x8] sm:$0xf]
        %v329 = vld [vmem:[#allocation2 + $0xc] sm:$0xf]
        %v330 = vld [vmem:[#allocation2 + $0x10] sm:$0xf]
        %v331 = vld [vmem:[#allocation2 + $0x14] sm:$0xf]
        %v332 = vld [vmem:[#allocation2 + $0x18] sm:$0xf]
        %v333 = vld [vmem:[#allocation2 + $0x1c] sm:$0xf]
        %v334 = vld [vmem:[#allocation2 + $0x20] sm:$0xf]
        %v335 = vld [vmem:[#allocation2 + $0x24] sm:$0xf]
        %v336 = vld [vmem:[#allocation2 + $0x28] sm:$0xf]
        %v337 = vld [vmem:[#allocation2 + $0x2c] sm:$0xf]
        %v338 = vld [vmem:[#allocation2 + $0x30] sm:$0xf]
        %v339 = vld [vmem:[#allocation2 + $0x34] sm:$0xf]
        %v340 = vld [vmem:[#allocation2 + $0x38] sm:$0xf]
        %v341 = vld [vmem:[#allocation2 + $0x3c] sm:$0xf]
        %v342 = vld [vmem:[%s2] sm:$0x1]
        %v344 = vperm.slane %v342, 0
        %v362 = vunpack.c.l.b16 %v326
        %v363 = vunpack.c.l.b16 %v327
        %v364 = vunpack.c.l.b16 %v328
        %v365 = vunpack.c.l.b16 %v329
        %v366 = vunpack.c.l.b16 %v330
        %v367 = vunpack.c.l.b16 %v331
        %v368 = vunpack.c.l.b16 %v332
        %v369 = vunpack.c.l.b16 %v333
        %v370 = vunpack.c.l.b16 %v334
        %v371 = vunpack.c.l.b16 %v335
        %v372 = vunpack.c.l.b16 %v336
        %v373 = vunpack.c.l.b16 %v337
        %v374 = vunpack.c.l.b16 %v338
        %v375 = vunpack.c.l.b16 %v339
        %v376 = vunpack.c.l.b16 %v340
        %v377 = vunpack.c.l.b16 %v341
        %v378 = vpack.c.b16 %v363, %v362
        %v379 = vpack.c.b16 %v365, %v364
        %v380 = vpack.c.b16 %v367, %v366
        %v381 = vpack.c.b16 %v369, %v368
        %v382 = vpack.c.b16 %v371, %v370
        %v383 = vpack.c.b16 %v373, %v372
        %v384 = vpack.c.b16 %v375, %v374
        %v385 = vpack.c.b16 %v377, %v376
        %394 = vmatpush.bf16.msra.mxu0 %v385
        %395 = vmatpush.bf16.msra.mxu0 %v384
        %396 = vmatpush.bf16.msra.mxu0 %v383
        %397 = vmatpush.bf16.msra.mxu0 %v382
        %398 = vmatpush.bf16.msra.mxu0 %v381
        %399 = vmatpush.bf16.msra.mxu0 %v380
        %400 = vmatpush.bf16.msra.mxu0 %v379
        %401 = vmatpush.bf16.msra.mxu0 %v378
        %402 = vmatmul.bf16.gmra.mxu0 %v325
        %v403 = vpop.f32.mrf.mxu0
        %v404 = vadd.f32 %v344, %v403
        %v405 = vpop.f32.mrf.mxu0
        %406 = vdwg.mxu0
        %v407 = vmax.f32 %v404, 0.0
        %v408 = vpack.c.bf16 %v407, %v407
        %v409 = vld [vmem:[#allocation4] sm:$0xf]
        %v410 = vld [vmem:[#allocation4 + $0x4] sm:$0xf]
        %v411 = vld [vmem:[#allocation4 + $0x8] sm:$0xf]
        %v412 = vld [vmem:[#allocation4 + $0xc] sm:$0xf]
        %v413 = vld [vmem:[#allocation4 + $0x10] sm:$0xf]
        %v414 = vld [vmem:[#allocation4 + $0x14] sm:$0xf]
        %v415 = vld [vmem:[#allocation4 + $0x18] sm:$0xf]
        %v416 = vld [vmem:[#allocation4 + $0x1c] sm:$0xf]
        %v417 = vld [vmem:[#allocation4 + $0x20] sm:$0xf]
        %v418 = vld [vmem:[#allocation4 + $0x24] sm:$0xf]
        %v419 = vld [vmem:[#allocation4 + $0x28] sm:$0xf]
        %v420 = vld [vmem:[#allocation4 + $0x2c] sm:$0xf]
        %v421 = vld [vmem:[#allocation4 + $0x30] sm:$0xf]
        %v422 = vld [vmem:[#allocation4 + $0x34] sm:$0xf]
        %v423 = vld [vmem:[#allocation4 + $0x38] sm:$0xf]
        %v424 = vld [vmem:[#allocation4 + $0x3c] sm:$0xf]
        %v425 = vld [vmem:[%s4] sm:$0x1]
        %v427 = vperm.slane %v425, 0
        %v445 = vunpack.c.l.b16 %v409
        %v446 = vunpack.c.l.b16 %v410
        %v447 = vunpack.c.l.b16 %v411
        %v448 = vunpack.c.l.b16 %v412
        %v449 = vunpack.c.l.b16 %v413
        %v450 = vunpack.c.l.b16 %v414
        %v451 = vunpack.c.l.b16 %v415
        %v452 = vunpack.c.l.b16 %v416
        %v453 = vunpack.c.l.b16 %v417
        %v454 = vunpack.c.l.b16 %v418
        %v455 = vunpack.c.l.b16 %v419
        %v456 = vunpack.c.l.b16 %v420
        %v457 = vunpack.c.l.b16 %v421
        %v458 = vunpack.c.l.b16 %v422
        %v459 = vunpack.c.l.b16 %v423
        %v460 = vunpack.c.l.b16 %v424
        %v461 = vpack.c.b16 %v446, %v445
        %v462 = vpack.c.b16 %v448, %v447
        %v463 = vpack.c.b16 %v450, %v449
        %v464 = vpack.c.b16 %v452, %v451
        %v465 = vpack.c.b16 %v454, %v453
        %v466 = vpack.c.b16 %v456, %v455
        %v467 = vpack.c.b16 %v458, %v457
        %v468 = vpack.c.b16 %v460, %v459
        %477 = vmatpush.bf16.msra.mxu0 %v468
        %478 = vmatpush.bf16.msra.mxu0 %v467
        %479 = vmatpush.bf16.msra.mxu0 %v466
        %480 = vmatpush.bf16.msra.mxu0 %v465
        %481 = vmatpush.bf16.msra.mxu0 %v464
        %482 = vmatpush.bf16.msra.mxu0 %v463
        %483 = vmatpush.bf16.msra.mxu0 %v462
        %484 = vmatpush.bf16.msra.mxu0 %v461
        %485 = vmatmul.bf16.gmra.mxu0 %v408
        %v486 = vpop.f32.mrf.mxu0
        %v487 = vadd.f32 %v427, %v486
        %v488 = vpop.f32.mrf.mxu0
        %489 = vdwg.mxu0
        %v490 = vmax.f32 %v487, 0.0
        %v491 = vpack.c.bf16 %v490, %v490
        %v492 = vld [vmem:[#allocation6] sm:$0xf]
        %v493 = vld [vmem:[#allocation6 + $0x4] sm:$0xf]
        %v494 = vld [vmem:[#allocation6 + $0x8] sm:$0xf]
        %v495 = vld [vmem:[#allocation6 + $0xc] sm:$0xf]
        %v496 = vld [vmem:[#allocation6 + $0x10] sm:$0xf]
        %v497 = vld [vmem:[#allocation6 + $0x14] sm:$0xf]
        %v498 = vld [vmem:[#allocation6 + $0x18] sm:$0xf]
        %v499 = vld [vmem:[#allocation6 + $0x1c] sm:$0xf]
        %v500 = vld [vmem:[#allocation6 + $0x20] sm:$0xf]
        %v501 = vld [vmem:[#allocation6 + $0x24] sm:$0xf]
        %v502 = vld [vmem:[#allocation6 + $0x28] sm:$0xf]
        %v503 = vld [vmem:[#allocation6 + $0x2c] sm:$0xf]
        %v504 = vld [vmem:[#allocation6 + $0x30] sm:$0xf]
        %v505 = vld [vmem:[#allocation6 + $0x34] sm:$0xf]
        %v506 = vld [vmem:[#allocation6 + $0x38] sm:$0xf]
        %v507 = vld [vmem:[#allocation6 + $0x3c] sm:$0xf]
        %v508 = vld [vmem:[%s6] sm:$0x1]
        %v510 = vperm.slane %v508, 0
        %v528 = vunpack.c.l.b16 %v492
        %v529 = vunpack.c.l.b16 %v493
        %v530 = vunpack.c.l.b16 %v494
        %v531 = vunpack.c.l.b16 %v495
        %v532 = vunpack.c.l.b16 %v496
        %v533 = vunpack.c.l.b16 %v497
        %v534 = vunpack.c.l.b16 %v498
        %v535 = vunpack.c.l.b16 %v499
        %v536 = vunpack.c.l.b16 %v500
        %v537 = vunpack.c.l.b16 %v501
        %v538 = vunpack.c.l.b16 %v502
        %v539 = vunpack.c.l.b16 %v503
        %v540 = vunpack.c.l.b16 %v504
        %v541 = vunpack.c.l.b16 %v505
        %v542 = vunpack.c.l.b16 %v506
        %v543 = vunpack.c.l.b16 %v507
        %v544 = vpack.c.b16 %v529, %v528
        %v545 = vpack.c.b16 %v531, %v530
        %v546 = vpack.c.b16 %v533, %v532
        %v547 = vpack.c.b16 %v535, %v534
        %v548 = vpack.c.b16 %v537, %v536
        %v549 = vpack.c.b16 %v539, %v538
        %v550 = vpack.c.b16 %v541, %v540
        %v551 = vpack.c.b16 %v543, %v542
        %560 = vmatpush.bf16.msra.mxu0 %v551
        %561 = vmatpush.bf16.msra.mxu0 %v550
        %562 = vmatpush.bf16.msra.mxu0 %v549
        %563 = vmatpush.bf16.msra.mxu0 %v548
        %564 = vmatpush.bf16.msra.mxu0 %v547
        %565 = vmatpush.bf16.msra.mxu0 %v546
        %566 = vmatpush.bf16.msra.mxu0 %v545
        %567 = vmatpush.bf16.msra.mxu0 %v544
        %568 = vmatmul.bf16.gmra.mxu0 %v491
        %v569 = vpop.f32.mrf.mxu0
        %v570 = vadd.f32 %v510, %v569
        %v571 = vpop.f32.mrf.mxu0
        %572 = vdwg.mxu0
        %573 = vst [vmem:[%s323] sm:$0xff] %v570
        %p574 = scmp.lt.s32.totalorder %s20, 1
        %s575 = scalar_select %p574, %s20, 1
        %s576 = smul.addr %s575, 8
        %s577 = scalar_lea.vmem %s7, %s576
        // Predicated region
        $region61: #{mlp_forward.1} parent=47 // pred_check
          %p578 = pneg %p190
        $region62: #{mlp_forward.1} parent=47 // pred_check_branch
          %580 = sbr.rel (%p578) target = $region64
        $region63: #{mlp_forward.1} parent=47 // pred_region
          _
        $region64: #{mlp_forward.1} parent=47 // pred_fallthru
          _
      $region48: #{mlp_forward.1} parent=5 // pred_fallthru
        _
      %p581 = scmp.le.s32.totalorder 2, %s15
      // Predicated region
      $region65: #{mlp_forward.1} parent=5 // pred_check
        %p582 = pneg %p581
      $region66: #{mlp_forward.1} parent=5 // pred_check_branch
        %584 = sbr.rel (%p582) target = $region68
      $region67: #{mlp_forward.1} parent=5 // pred_region
        %s585 = ssub.s32 %s15, 2
        // Predicated region
        $region69: #{mlp_forward.1} parent=67 // pred_check
          %p586 = pneg %p196
        $region70: #{mlp_forward.1} parent=67 // pred_check_branch
          %588 = sbr.rel (%p586) target = $region72
        $region71: #{mlp_forward.1} parent=67 // pred_region
          %p589 = scmp.lt.s32.totalorder %s21, 1
          %s590 = scalar_select %p589, %s21, 1
          %s591 = smul.addr %s590, 8
          %s592 = scalar_lea.vmem %s7, %s591
        $region72: #{mlp_forward.1} parent=67 // pred_fallthru
          _
      $region68: #{mlp_forward.1} parent=5 // pred_fallthru
        _
    $region6: #{mlp_forward.1} parent=1 // loop_footer
      %s19 = sadd.s32 1, %s15
    $region7: #{mlp_forward.1} parent=1 // loop_footer_branch
      %14 = sbr.rel target = $region3
    $region8: #{mlp_forward.1} parent=1 // loop_exit
      _
    %593 = vsyncpa [#allocation3], 1
    %s594 = scalar_lea.sflag [#allocation3], 1
    %595 = vsyncpa %s594, 1
    %596 = vsyncpa [#allocation5], 1

// kernel: mlp_forward.1
$region0: #{mlp_forward.1}
  #allocation0 [shape = 'u32[]', space=smem, size = 0x4, offset = 0x4, fixed_abs, tag = 'smem constant byte address 0x4 - core index']
  #allocation1 [shape = 'u32[72,128]{1,0:T(1,128)}', space=vmem, size = 0x9000, scoped, tag = 'internal scratch']
  %s0 = inlined_call_operand.vmem [shape: f32[16,128], index: 0, kind: input, shape index: {}]
  %s1 = inlined_call_operand.hbm [shape: bf16[128,128], index: 1, kind: input, shape index: {}]
  %s2 = inlined_call_operand.vmem [shape: f32[1,128], index: 2, kind: input, shape index: {}]
  %s3 = inlined_call_operand.hbm [shape: bf16[128,128], index: 3, kind: input, shape index: {}]
  %s4 = inlined_call_operand.vmem [shape: f32[1,128], index: 4, kind: input, shape index: {}]
  %s5 = inlined_call_operand.hbm [shape: bf16[128,128], index: 5, kind: input, shape index: {}]
  %s6 = inlined_call_operand.vmem [shape: f32[1,128], index: 6, kind: input, shape index: {}]
  %s7 = inlined_call_operand.vmem [shape: f32[16,128], index: 7, kind: output, shape index: {}]
  %s8 = sld [smem:[#allocation0]]
  $region73: #{mlp_forward.1} parent=0
    _
  %s10 = ssub.s32 1, %s8
  %s11 = scalar_select 0, %s10, %s8
  $region1: #{mlp_forward.1} parent=0
    #allocation2 [shape = 'u8[32768]{0}', space=vmem, size = 0x8000, scoped, tag = 'input window, operand 1, single buffered']
    #allocation3 [shape = 's32[2]{0}', space=sflag, size = 0x8, scoped, tag = 'scoped memory for mlp_forward.1']
    #allocation4 [shape = 'u8[32768]{0}', space=vmem, size = 0x8000, scoped, tag = 'input window, operand 3, single buffered']
    #allocation5 [shape = 's32[1]{0}', space=sflag, size = 0x4, scoped, tag = 'scoped memory for mlp_forward.1']
    #allocation6 [shape = 'u8[32768]{0}', space=vmem, size = 0x8000, scoped, tag = 'input window, operand 5, single buffered']
    %12 = vsyncpa [#allocation3], 0
    %13 = vsyncpa [#allocation5], 0
    loop: start=0, step=1, limit=4
    $region2: #{mlp_forward.1} parent=1 // loop_pre_header
      _
    $region3: #{mlp_forward.1} parent=1 // loop_header
      %s15 = sphi 0, %s19
      %p16 = scmp.ge.s32.totalorder %s15, 4
      %s25 = sphi 0, %s27
      %s28 = sphi 0, %s25
      %s29 = sphi 0, %s28
      %s45 = sphi 0, %s29
      %s49 = sphi 0, %s49
      %s51 = sphi 0, %s49
      %s52 = sphi 0, %s51
      %s66 = sphi 0, %s52
      %s70 = sphi 0, %s70
      %s72 = sphi 0, %s70
      %s73 = sphi 0, %s72
      %s87 = sphi 0, %s73
      %s91 = sphi 0, %s91
      %s93 = sphi 0, %s91
      %s94 = sphi 0, %s93
      %s108 = sphi 0, %s94
      %s112 = sphi 0, %s112
      %s114 = sphi 0, %s112
      %s115 = sphi 0, %s114
      %s129 = sphi 0, %s115
      %s133 = sphi 0, %s133
      %s135 = sphi 0, %s133
      %s136 = sphi 0, %s135
      %s150 = sphi 0, %s136
      %s154 = sphi 0, %s154
      %s156 = sphi 0, %s154
      %s157 = sphi 0, %s156
      %s171 = sphi 0, %s157
      %s177 = sphi 0, %s179
      %s180 = sphi 0, %s177
      %s181 = sphi 0, %s180
      %s197 = sphi 0, %s181
    $region4: #{mlp_forward.1} parent=1 // loop_header_branch
      %18 = sbr.rel (%p16) target = $region8
    $region5: #{mlp_forward.1} parent=1 // loop_body
      %s20 = ssub.s32 %s15, 1
      %s21 = ssub.s32 %s15, 2
      %s22 = sadd.s32 %s15, 1
      %s23 = ssub.s32 %s15, %s22
      %p24 = scmp.eq.s32.totalorder %s23, 0
      %s26 = sadd.s32 %s25, 1
      %s27 = scalar_select %p24, %s25, %s26
      %p30 = pneg %p24
      %p31 = scmp.eq.s32.totalorder %s15, 1
      %p32 = por %p30, %p31
      %p33 = scmp.ne.s32.totalorder %s25, %s28
      %p34 = scmp.eq.s32.totalorder %s15, 0
      %p35 = por %p33, %p34
      %p36 = scmp.ne.s32.totalorder %s25, %s28
      %p37 = scmp.eq.s32.totalorder %s20, 1
      %p38 = por %p36, %p37
      %p39 = scmp.ne.s32.totalorder %s28, %s29
      %p40 = scmp.eq.s32.totalorder %s20, 0
      %p41 = por %p39, %p40
      %p42 = scmp.ne.s32.totalorder %s28, %s29
      %p43 = scmp.eq.s32.totalorder %s21, 1
      %p44 = por %p42, %p43
      %p46 = scmp.ne.s32.totalorder %s29, %s45
      %p47 = scmp.eq.s32.totalorder %s21, 0
      %p48 = por %p46, %p47
      %s50 = sadd.s32 %s49, 1
      %p53 = scmp.eq.s32.totalorder %s15, 1
      %p54 = scmp.ne.s32.totalorder %s49, %s51
      %p55 = scmp.eq.s32.totalorder %s15, 0
      %p56 = por %p54, %p55
      %p57 = scmp.ne.s32.totalorder %s49, %s51
      %p58 = scmp.eq.s32.totalorder %s20, 1
      %p59 = por %p57, %p58
      %p60 = scmp.ne.s32.totalorder %s51, %s52
      %p61 = scmp.eq.s32.totalorder %s20, 0
      %p62 = por %p60, %p61
      %p63 = scmp.ne.s32.totalorder %s51, %s52
      %p64 = scmp.eq.s32.totalorder %s21, 1
      %p65 = por %p63, %p64
      %p67 = scmp.ne.s32.totalorder %s52, %s66
      %p68 = scmp.eq.s32.totalorder %s21, 0
      %p69 = por %p67, %p68
      %s71 = sadd.s32 %s70, 1
      %p74 = scmp.eq.s32.totalorder %s15, 1
      %p75 = scmp.ne.s32.totalorder %s70, %s72
      %p76 = scmp.eq.s32.totalorder %s15, 0
      %p77 = por %p75, %p76
      %p78 = scmp.ne.s32.totalorder %s70, %s72
      %p79 = scmp.eq.s32.totalorder %s20, 1
      %p80 = por %p78, %p79
      %p81 = scmp.ne.s32.totalorder %s72, %s73
      %p82 = scmp.eq.s32.totalorder %s20, 0
      %p83 = por %p81, %p82
      %p84 = scmp.ne.s32.totalorder %s72, %s73
      %p85 = scmp.eq.s32.totalorder %s21, 1
      %p86 = por %p84, %p85
      %p88 = scmp.ne.s32.totalorder %s73, %s87
      %p89 = scmp.eq.s32.totalorder %s21, 0
      %p90 = por %p88, %p89
      %s92 = sadd.s32 %s91, 1
      %p95 = scmp.eq.s32.totalorder %s15, 1
      %p96 = scmp.ne.s32.totalorder %s91, %s93
      %p97 = scmp.eq.s32.totalorder %s15, 0
      %p98 = por %p96, %p97
      %p99 = scmp.ne.s32.totalorder %s91, %s93
      %p100 = scmp.eq.s32.totalorder %s20, 1
      %p101 = por %p99, %p100
      %p102 = scmp.ne.s32.totalorder %s93, %s94
      %p103 = scmp.eq.s32.totalorder %s20, 0
      %p104 = por %p102, %p103
      %p105 = scmp.ne.s32.totalorder %s93, %s94
      %p106 = scmp.eq.s32.totalorder %s21, 1
      %p107 = por %p105, %p106
      %p109 = scmp.ne.s32.totalorder %s94, %s108
      %p110 = scmp.eq.s32.totalorder %s21, 0
      %p111 = por %p109, %p110
      %s113 = sadd.s32 %s112, 1
      %p116 = scmp.eq.s32.totalorder %s15, 1
      %p117 = scmp.ne.s32.totalorder %s112, %s114
      %p118 = scmp.eq.s32.totalorder %s15, 0
      %p119 = por %p117, %p118
      %p120 = scmp.ne.s32.totalorder %s112, %s114
      %p121 = scmp.eq.s32.totalorder %s20, 1
      %p122 = por %p120, %p121
      %p123 = scmp.ne.s32.totalorder %s114, %s115
      %p124 = scmp.eq.s32.totalorder %s20, 0
      %p125 = por %p123, %p124
      %p126 = scmp.ne.s32.totalorder %s114, %s115
      %p127 = scmp.eq.s32.totalorder %s21, 1
      %p128 = por %p126, %p127
      %p130 = scmp.ne.s32.totalorder %s115, %s129
      %p131 = scmp.eq.s32.totalorder %s21, 0
      %p132 = por %p130, %p131
      %s134 = sadd.s32 %s133, 1
      %p137 = scmp.eq.s32.totalorder %s15, 1
      %p138 = scmp.ne.s32.totalorder %s133, %s135
      %p139 = scmp.eq.s32.totalorder %s15, 0
      %p140 = por %p138, %p139
      %p141 = scmp.ne.s32.totalorder %s133, %s135
      %p142 = scmp.eq.s32.totalorder %s20, 1
      %p143 = por %p141, %p142
      %p144 = scmp.ne.s32.totalorder %s135, %s136
      %p145 = scmp.eq.s32.totalorder %s20, 0
      %p146 = por %p144, %p145
      %p147 = scmp.ne.s32.totalorder %s135, %s136
      %p148 = scmp.eq.s32.totalorder %s21, 1
      %p149 = por %p147, %p148
      %p151 = scmp.ne.s32.totalorder %s136, %s150
      %p152 = scmp.eq.s32.totalorder %s21, 0
      %p153 = por %p151, %p152
      %s155 = sadd.s32 %s154, 1
      %p158 = scmp.eq.s32.totalorder %s15, 1
      %p159 = scmp.ne.s32.totalorder %s154, %s156
      %p160 = scmp.eq.s32.totalorder %s15, 0
      %p161 = por %p159, %p160
      %p162 = scmp.ne.s32.totalorder %s154, %s156
      %p163 = scmp.eq.s32.totalorder %s20, 1
      %p164 = por %p162, %p163
      %p165 = scmp.ne.s32.totalorder %s156, %s157
      %p166 = scmp.eq.s32.totalorder %s20, 0
      %p167 = por %p165, %p166
      %p168 = scmp.ne.s32.totalorder %s156, %s157
      %p169 = scmp.eq.s32.totalorder %s21, 1
      %p170 = por %p168, %p169
      %p172 = scmp.ne.s32.totalorder %s157, %s171
      %p173 = scmp.eq.s32.totalorder %s21, 0
      %p174 = por %p172, %p173
      %s175 = ssub.s32 %s15, %s22
      %p176 = scmp.eq.s32.totalorder %s175, 0
      %s178 = sadd.s32 %s177, 1
      %s179 = scalar_select %p176, %s177, %s178
      %p182 = pneg %p176
      %p183 = scmp.eq.s32.totalorder %s15, 1
      %p184 = por %p182, %p183
      %p185 = scmp.ne.s32.totalorder %s177, %s180
      %p186 = scmp.eq.s32.totalorder %s15, 0
      %p187 = por %p185, %p186
      %p188 = scmp.ne.s32.totalorder %s177, %s180
      %p189 = scmp.eq.s32.totalorder %s20, 1
      %p190 = por %p188, %p189
      %p191 = scmp.ne.s32.totalorder %s180, %s181
      %p192 = scmp.eq.s32.totalorder %s20, 0
      %p193 = por %p191, %p192
      %p194 = scmp.ne.s32.totalorder %s180, %s181
      %p195 = scmp.eq.s32.totalorder %s21, 1
      %p196 = por %p194, %p195
      %p198 = scmp.ne.s32.totalorder %s181, %s197
      %p199 = scmp.eq.s32.totalorder %s21, 0
      %p200 = por %p198, %p199
      %p201 = scmp.le.s32.totalorder 1, %s15
      %p202 = scmp.lt.s32.totalorder %s15, 3
      %p203 = pnand %p201, %p202
      %p204 = pneg %p203
      // Predicated region
      $region9: #{mlp_forward.1} parent=5 // pred_check
        _
      $region10: #{mlp_forward.1} parent=5 // pred_check_branch
        %206 = sbr.rel (%p203) target = $region12
      $region11: #{mlp_forward.1} parent=5 // pred_region
        %s207 = ssub.s32 %s15, 1
        // Predicated region
        $region13: #{mlp_forward.1} parent=11 // pred_check
          %p208 = pneg %p62
        $region14: #{mlp_forward.1} parent=11 // pred_check_branch
          %210 = sbr.rel (%p208) target = $region16
        $region15: #{mlp_forward.1} parent=11 // pred_region
          %212 = vsyncadd [#allocation3], 0
          %s213 = sshll.u32 %s1, 4
          %s214 = int_to_ptr.hbm [resolvable:$true] %s213
          %s215 = sshll.u32 [#allocation2], 4
          %s216 = int_to_ptr.vmem [resolvable:$true] %s215
          %221 = dma.hbm_to_vmem [thread:$0]  %s214, 1024, %s216, [#allocation3], 64, 64, 4
        $region16: #{mlp_forward.1} parent=11 // pred_fallthru
          _
        // Predicated region
        $region17: #{mlp_forward.1} parent=11 // pred_check
          %p222 = pneg %p83
        $region18: #{mlp_forward.1} parent=11 // pred_check_branch
          %224 = sbr.rel (%p222) target = $region20
        $region19: #{mlp_forward.1} parent=11 // pred_region
          _
        $region20: #{mlp_forward.1} parent=11 // pred_fallthru
          _
        // Predicated region
        $region21: #{mlp_forward.1} parent=11 // pred_check
          %p225 = pneg %p104
        $region22: #{mlp_forward.1} parent=11 // pred_check_branch
          %227 = sbr.rel (%p225) target = $region24
        $region23: #{mlp_forward.1} parent=11 // pred_region
          %229 = vsyncadd [#allocation5], 0
          %s230 = sshll.u32 %s3, 4
          %s231 = int_to_ptr.hbm [resolvable:$true] %s230
          %s232 = sshll.u32 [#allocation4], 4
          %s233 = int_to_ptr.vmem [resolvable:$true] %s232
          %238 = dma.hbm_to_vmem [thread:$0]  %s231, 1024, %s233, [#allocation5], 64, 64, 4
        $region24: #{mlp_forward.1} parent=11 // pred_fallthru
          _
        // Predicated region
        $region25: #{mlp_forward.1} parent=11 // pred_check
          %p239 = pneg %p125
        $region26: #{mlp_forward.1} parent=11 // pred_check_branch
          %241 = sbr.rel (%p239) target = $region28
        $region27: #{mlp_forward.1} parent=11 // pred_region
          _
        $region28: #{mlp_forward.1} parent=11 // pred_fallthru
          _
        // Predicated region
        $region29: #{mlp_forward.1} parent=11 // pred_check
          %p242 = pneg %p146
        $region30: #{mlp_forward.1} parent=11 // pred_check_branch
          %244 = sbr.rel (%p242) target = $region32
        $region31: #{mlp_forward.1} parent=11 // pred_region
          %246 = vsyncadd [#allocation5], 0
          %s247 = sshll.u32 %s5, 4
          %s248 = int_to_ptr.hbm [resolvable:$true] %s247
          %s249 = sshll.u32 [#allocation6], 4
          %s250 = int_to_ptr.vmem [resolvable:$true] %s249
          %255 = dma.hbm_to_vmem [thread:$0]  %s248, 1024, %s250, [#allocation5], 64, 64, 4
        $region32: #{mlp_forward.1} parent=11 // pred_fallthru
          _
        // Predicated region
        $region33: #{mlp_forward.1} parent=11 // pred_check
          %p256 = pneg %p167
        $region34: #{mlp_forward.1} parent=11 // pred_check_branch
          %258 = sbr.rel (%p256) target = $region36
        $region35: #{mlp_forward.1} parent=11 // pred_region
          _
        $region36: #{mlp_forward.1} parent=11 // pred_fallthru
          _
      $region12: #{mlp_forward.1} parent=5 // pred_fallthru
        _
      %p259 = scmp.lt.s32.totalorder %s15, 2
      // Predicated region
      $region37: #{mlp_forward.1} parent=5 // pred_check
        %p260 = pneg %p259
      $region38: #{mlp_forward.1} parent=5 // pred_check_branch
        %262 = sbr.rel (%p260) target = $region40
      $region39: #{mlp_forward.1} parent=5 // pred_region
        // Predicated region
        $region41: #{mlp_forward.1} parent=39 // pred_check
          %p263 = pneg %p35
        $region42: #{mlp_forward.1} parent=39 // pred_check_branch
          %265 = sbr.rel (%p263) target = $region44
        $region43: #{mlp_forward.1} parent=39 // pred_region
          %p266 = scmp.lt.s32.totalorder %s15, 1
          %s267 = scalar_select %p266, %s15, 1
          %s268 = smul.addr %s267, 8
          %s269 = scalar_lea.vmem %s0, %s268
        $region44: #{mlp_forward.1} parent=39 // pred_fallthru
          _
      $region40: #{mlp_forward.1} parent=5 // pred_fallthru
        _
      %p270 = scmp.le.s32.totalorder 1, %s15
      %p271 = scmp.lt.s32.totalorder %s15, 3
      %p272 = pnand %p270, %p271
      %p273 = pneg %p272
      // Predicated region
      $region45: #{mlp_forward.1} parent=5 // pred_check
        _
      $region46: #{mlp_forward.1} parent=5 // pred_check_branch
        %275 = sbr.rel (%p272) target = $region48
      $region47: #{mlp_forward.1} parent=5 // pred_region
        %s276 = ssub.s32 %s15, 1
        // Predicated region
        $region49: #{mlp_forward.1} parent=47 // pred_check
          %p277 = pneg %p62
        $region50: #{mlp_forward.1} parent=47 // pred_check_branch
          %279 = sbr.rel (%p277) target = $region52
        $region51: #{mlp_forward.1} parent=47 // pred_region
          %281 = dma.done [#allocation3], 1024
        $region52: #{mlp_forward.1} parent=47 // pred_fallthru
          _
        // Predicated region
        $region53: #{mlp_forward.1} parent=47 // pred_check
          %p282 = pneg %p104
        $region54: #{mlp_forward.1} parent=47 // pred_check_branch
          %284 = sbr.rel (%p282) target = $region56
        $region55: #{mlp_forward.1} parent=47 // pred_region
          %286 = dma.done [#allocation5], 1024
        $region56: #{mlp_forward.1} parent=47 // pred_fallthru
          _
        // Predicated region
        $region57: #{mlp_forward.1} parent=47 // pred_check
          %p287 = pneg %p146
        $region58: #{mlp_forward.1} parent=47 // pred_check_branch
          %289 = sbr.rel (%p287) target = $region60
        $region59: #{mlp_forward.1} parent=47 // pred_region
          %291 = dma.done [#allocation5], 1024
        $region60: #{mlp_forward.1} parent=47 // pred_fallthru
          _
        %p292 = scmp.lt.s32.totalorder %s20, 1
        %s293 = scalar_select %p292, %s20, 1
        %s294 = smul.addr %s293, 8
        %s295 = scalar_lea.vmem %s0, %s294
        %p296 = pneg %p41
        %p297 = pneg %p38
        %p298 = pneg %p62
        %p299 = pneg %p59
        %p300 = pneg %p83
        %p301 = pneg %p80
        %p302 = pneg %p104
        %p303 = pneg %p101
        %p304 = pneg %p125
        %p305 = pneg %p122
        %p306 = pneg %p146
        %p307 = pneg %p143
        %p308 = pneg %p167
        %p309 = pneg %p164
        %p310 = pneg %p193
        %p311 = pneg %p190
        %p312 = scmp.lt.s32.totalorder %s20, 1
        %s313 = scalar_select %p312, %s20, 1
        %s314 = smul.addr %s313, 8
        %s315 = scalar_lea.vmem %s7, %s314
        %p316 = scmp.lt.s32.totalorder %s20, 1
        %s317 = scalar_select %p316, %s20, 1
        %s318 = smul.addr %s317, 8
        %s319 = scalar_lea.vmem %s0, %s318
        %p320 = scmp.lt.s32.totalorder %s20, 1
        %s321 = scalar_select %p320, %s20, 1
        %s322 = smul.addr %s321, 8
        %s323 = scalar_lea.vmem %s7, %s322
        %v324 = vld [vmem:[%s319] sm:$0xff]
        %v325 = vpack.c.bf16 %v324, %v324
        %v326 = vld [vmem:[#allocation2] sm:$0xf]
        %v327 = vld [vmem:[#allocation2 + $0x4] sm:$0xf]
        %v328 = vld [vmem:[#allocation2 + $0x8] sm:$0xf]
        %v329 = vld [vmem:[#allocation2 + $0xc] sm:$0xf]
        %v330 = vld [vmem:[#allocation2 + $0x10] sm:$0xf]
        %v331 = vld [vmem:[#allocation2 + $0x14] sm:$0xf]
        %v332 = vld [vmem:[#allocation2 + $0x18] sm:$0xf]
        %v333 = vld [vmem:[#allocation2 + $0x1c] sm:$0xf]
        %v334 = vld [vmem:[#allocation2 + $0x20] sm:$0xf]
        %v335 = vld [vmem:[#allocation2 + $0x24] sm:$0xf]
        %v336 = vld [vmem:[#allocation2 + $0x28] sm:$0xf]
        %v337 = vld [vmem:[#allocation2 + $0x2c] sm:$0xf]
        %v338 = vld [vmem:[#allocation2 + $0x30] sm:$0xf]
        %v339 = vld [vmem:[#allocation2 + $0x34] sm:$0xf]
        %v340 = vld [vmem:[#allocation2 + $0x38] sm:$0xf]
        %v341 = vld [vmem:[#allocation2 + $0x3c] sm:$0xf]
        %v342 = vld [vmem:[%s2] sm:$0x1]
        %v344 = vperm.slane %v342, 0
        %v362 = vunpack.c.l.b16 %v326
        %v363 = vunpack.c.l.b16 %v327
        %v364 = vunpack.c.l.b16 %v328
        %v365 = vunpack.c.l.b16 %v329
        %v366 = vunpack.c.l.b16 %v330
        %v367 = vunpack.c.l.b16 %v331
        %v368 = vunpack.c.l.b16 %v332
        %v369 = vunpack.c.l.b16 %v333
        %v370 = vunpack.c.l.b16 %v334
        %v371 = vunpack.c.l.b16 %v335
        %v372 = vunpack.c.l.b16 %v336
        %v373 = vunpack.c.l.b16 %v337
        %v374 = vunpack.c.l.b16 %v338
        %v375 = vunpack.c.l.b16 %v339
        %v376 = vunpack.c.l.b16 %v340
        %v377 = vunpack.c.l.b16 %v341
        %v378 = vpack.c.b16 %v363, %v362
        %v379 = vpack.c.b16 %v365, %v364
        %v380 = vpack.c.b16 %v367, %v366
        %v381 = vpack.c.b16 %v369, %v368
        %v382 = vpack.c.b16 %v371, %v370
        %v383 = vpack.c.b16 %v373, %v372
        %v384 = vpack.c.b16 %v375, %v374
        %v385 = vpack.c.b16 %v377, %v376
        %394 = vmatpush.bf16.msra.mxu0 %v385
        %395 = vmatpush.bf16.msra.mxu0 %v384
        %396 = vmatpush.bf16.msra.mxu0 %v383
        %397 = vmatpush.bf16.msra.mxu0 %v382
        %398 = vmatpush.bf16.msra.mxu0 %v381
        %399 = vmatpush.bf16.msra.mxu0 %v380
        %400 = vmatpush.bf16.msra.mxu0 %v379
        %401 = vmatpush.bf16.msra.mxu0 %v378
        %402 = vmatmul.bf16.gmra.mxu0 %v325
        %v403 = vpop.f32.mrf.mxu0
        %v404 = vadd.f32 %v344, %v403
        %v405 = vpop.f32.mrf.mxu0
        %406 = vdwg.mxu0
        %v407 = vmax.f32 %v404, 0.0
        %v408 = vpack.c.bf16 %v407, %v407
        %v409 = vld [vmem:[#allocation4] sm:$0xf]
        %v410 = vld [vmem:[#allocation4 + $0x4] sm:$0xf]
        %v411 = vld [vmem:[#allocation4 + $0x8] sm:$0xf]
        %v412 = vld [vmem:[#allocation4 + $0xc] sm:$0xf]
        %v413 = vld [vmem:[#allocation4 + $0x10] sm:$0xf]
        %v414 = vld [vmem:[#allocation4 + $0x14] sm:$0xf]
        %v415 = vld [vmem:[#allocation4 + $0x18] sm:$0xf]
        %v416 = vld [vmem:[#allocation4 + $0x1c] sm:$0xf]
        %v417 = vld [vmem:[#allocation4 + $0x20] sm:$0xf]
        %v418 = vld [vmem:[#allocation4 + $0x24] sm:$0xf]
        %v419 = vld [vmem:[#allocation4 + $0x28] sm:$0xf]
        %v420 = vld [vmem:[#allocation4 + $0x2c] sm:$0xf]
        %v421 = vld [vmem:[#allocation4 + $0x30] sm:$0xf]
        %v422 = vld [vmem:[#allocation4 + $0x34] sm:$0xf]
        %v423 = vld [vmem:[#allocation4 + $0x38] sm:$0xf]
        %v424 = vld [vmem:[#allocation4 + $0x3c] sm:$0xf]
        %v425 = vld [vmem:[%s4] sm:$0x1]
        %v427 = vperm.slane %v425, 0
        %v445 = vunpack.c.l.b16 %v409
        %v446 = vunpack.c.l.b16 %v410
        %v447 = vunpack.c.l.b16 %v411
        %v448 = vunpack.c.l.b16 %v412
        %v449 = vunpack.c.l.b16 %v413
        %v450 = vunpack.c.l.b16 %v414
        %v451 = vunpack.c.l.b16 %v415
        %v452 = vunpack.c.l.b16 %v416
        %v453 = vunpack.c.l.b16 %v417
        %v454 = vunpack.c.l.b16 %v418
        %v455 = vunpack.c.l.b16 %v419
        %v456 = vunpack.c.l.b16 %v420
        %v457 = vunpack.c.l.b16 %v421
        %v458 = vunpack.c.l.b16 %v422
        %v459 = vunpack.c.l.b16 %v423
        %v460 = vunpack.c.l.b16 %v424
        %v461 = vpack.c.b16 %v446, %v445
        %v462 = vpack.c.b16 %v448, %v447
        %v463 = vpack.c.b16 %v450, %v449
        %v464 = vpack.c.b16 %v452, %v451
        %v465 = vpack.c.b16 %v454, %v453
        %v466 = vpack.c.b16 %v456, %v455
        %v467 = vpack.c.b16 %v458, %v457
        %v468 = vpack.c.b16 %v460, %v459
        %477 = vmatpush.bf16.msra.mxu0 %v468
        %478 = vmatpush.bf16.msra.mxu0 %v467
        %479 = vmatpush.bf16.msra.mxu0 %v466
        %480 = vmatpush.bf16.msra.mxu0 %v465
        %481 = vmatpush.bf16.msra.mxu0 %v464
        %482 = vmatpush.bf16.msra.mxu0 %v463
        %483 = vmatpush.bf16.msra.mxu0 %v462
        %484 = vmatpush.bf16.msra.mxu0 %v461
        %485 = vmatmul.bf16.gmra.mxu0 %v408
        %v486 = vpop.f32.mrf.mxu0
        %v487 = vadd.f32 %v427, %v486
        %v488 = vpop.f32.mrf.mxu0
        %489 = vdwg.mxu0
        %v490 = vmax.f32 %v487, 0.0
        %v491 = vpack.c.bf16 %v490, %v490
        %v492 = vld [vmem:[#allocation6] sm:$0xf]
        %v493 = vld [vmem:[#allocation6 + $0x4] sm:$0xf]
        %v494 = vld [vmem:[#allocation6 + $0x8] sm:$0xf]
        %v495 = vld [vmem:[#allocation6 + $0xc] sm:$0xf]
        %v496 = vld [vmem:[#allocation6 + $0x10] sm:$0xf]
        %v497 = vld [vmem:[#allocation6 + $0x14] sm:$0xf]
        %v498 = vld [vmem:[#allocation6 + $0x18] sm:$0xf]
        %v499 = vld [vmem:[#allocation6 + $0x1c] sm:$0xf]
        %v500 = vld [vmem:[#allocation6 + $0x20] sm:$0xf]
        %v501 = vld [vmem:[#allocation6 + $0x24] sm:$0xf]
        %v502 = vld [vmem:[#allocation6 + $0x28] sm:$0xf]
        %v503 = vld [vmem:[#allocation6 + $0x2c] sm:$0xf]
        %v504 = vld [vmem:[#allocation6 + $0x30] sm:$0xf]
        %v505 = vld [vmem:[#allocation6 + $0x34] sm:$0xf]
        %v506 = vld [vmem:[#allocation6 + $0x38] sm:$0xf]
        %v507 = vld [vmem:[#allocation6 + $0x3c] sm:$0xf]
        %v508 = vld [vmem:[%s6] sm:$0x1]
        %v510 = vperm.slane %v508, 0
        %v528 = vunpack.c.l.b16 %v492
        %v529 = vunpack.c.l.b16 %v493
        %v530 = vunpack.c.l.b16 %v494
        %v531 = vunpack.c.l.b16 %v495
        %v532 = vunpack.c.l.b16 %v496
        %v533 = vunpack.c.l.b16 %v497
        %v534 = vunpack.c.l.b16 %v498
        %v535 = vunpack.c.l.b16 %v499
        %v536 = vunpack.c.l.b16 %v500
        %v537 = vunpack.c.l.b16 %v501
        %v538 = vunpack.c.l.b16 %v502
        %v539 = vunpack.c.l.b16 %v503
        %v540 = vunpack.c.l.b16 %v504
        %v541 = vunpack.c.l.b16 %v505
        %v542 = vunpack.c.l.b16 %v506
        %v543 = vunpack.c.l.b16 %v507
        %v544 = vpack.c.b16 %v529, %v528
        %v545 = vpack.c.b16 %v531, %v530
        %v546 = vpack.c.b16 %v533, %v532
        %v547 = vpack.c.b16 %v535, %v534
        %v548 = vpack.c.b16 %v537, %v536
        %v549 = vpack.c.b16 %v539, %v538
        %v550 = vpack.c.b16 %v541, %v540
        %v551 = vpack.c.b16 %v543, %v542
        %560 = vmatpush.bf16.msra.mxu0 %v551
        %561 = vmatpush.bf16.msra.mxu0 %v550
        %562 = vmatpush.bf16.msra.mxu0 %v549
        %563 = vmatpush.bf16.msra.mxu0 %v548
        %564 = vmatpush.bf16.msra.mxu0 %v547
        %565 = vmatpush.bf16.msra.mxu0 %v546
        %566 = vmatpush.bf16.msra.mxu0 %v545
        %567 = vmatpush.bf16.msra.mxu0 %v544
        %568 = vmatmul.bf16.gmra.mxu0 %v491
        %v569 = vpop.f32.mrf.mxu0
        %v570 = vadd.f32 %v510, %v569
        %v571 = vpop.f32.mrf.mxu0
        %572 = vdwg.mxu0
        %573 = vst [vmem:[%s323] sm:$0xff] %v570
        %p574 = scmp.lt.s32.totalorder %s20, 1
        %s575 = scalar_select %p574, %s20, 1
        %s576 = smul.addr %s575, 8
        %s577 = scalar_lea.vmem %s7, %s576
        // Predicated region
        $region61: #{mlp_forward.1} parent=47 // pred_check
          %p578 = pneg %p190
        $region62: #{mlp_forward.1} parent=47 // pred_check_branch
          %580 = sbr.rel (%p578) target = $region64
        $region63: #{mlp_forward.1} parent=47 // pred_region
          _
        $region64: #{mlp_forward.1} parent=47 // pred_fallthru
          _
      $region48: #{mlp_forward.1} parent=5 // pred_fallthru
        _
      %p581 = scmp.le.s32.totalorder 2, %s15
      // Predicated region
      $region65: #{mlp_forward.1} parent=5 // pred_check
        %p582 = pneg %p581
      $region66: #{mlp_forward.1} parent=5 // pred_check_branch
        %584 = sbr.rel (%p582) target = $region68
      $region67: #{mlp_forward.1} parent=5 // pred_region
        %s585 = ssub.s32 %s15, 2
        // Predicated region
        $region69: #{mlp_forward.1} parent=67 // pred_check
          %p586 = pneg %p196
        $region70: #{mlp_forward.1} parent=67 // pred_check_branch
          %588 = sbr.rel (%p586) target = $region72
        $region71: #{mlp_forward.1} parent=67 // pred_region
          %p589 = scmp.lt.s32.totalorder %s21, 1
          %s590 = scalar_select %p589, %s21, 1
          %s591 = smul.addr %s590, 8
          %s592 = scalar_lea.vmem %s7, %s591
        $region72: #{mlp_forward.1} parent=67 // pred_fallthru
          _
      $region68: #{mlp_forward.1} parent=5 // pred_fallthru
        _
    $region6: #{mlp_forward.1} parent=1 // loop_footer
      %s19 = sadd.s32 1, %s15
    $region7: #{mlp_forward.1} parent=1 // loop_footer_branch
      %14 = sbr.rel target = $region3
    $region8: #{mlp_forward.1} parent=1 // loop_exit
      _
    %593 = vsyncpa [#allocation3], 1
    %s594 = scalar_lea.sflag [#allocation3], 1
    %595 = vsyncpa %s594, 1
    %596 = vsyncpa [#allocation5], 1

</llo_original>
